<compile_context>
chip_gen: v7x
topology: tpu7x:2x2x1
jax: 0.10.0
libtpu: 0.0.40
codegen_flags: <defaults>
</compile_context>

<pallas_src>
import math

import jax
import jax.numpy as jnp
from jax.experimental import pallas as pl
from jax.experimental.pallas import tpu as pltpu

LANE = 128
SUBLANE = 8


def _pad_to(n, m):
    return ((n + m - 1) // m) * m


# ---------------------------------------------------------------------------
# Kernel factory: `num_hidden` x (Linear + leaky_relu), then the mean and
# logvar heads, each writing its own (tm, out_dim) output tile.
# ---------------------------------------------------------------------------
def _make_decoder_kernel(num_hidden):
    def kernel(*refs):
        x_ref = refs[0]
        mean_ref, logvar_ref = refs[-2], refs[-1]
        neg_slope = 0.01  # F.leaky_relu default

        h = x_ref[...]
        idx = 1
        for _ in range(num_hidden):
            w_ref, b_ref = refs[idx], refs[idx + 1]
            idx += 2
            # MXU matmul with f32 accumulation; bias add + leaky_relu in f32 on VPU.
            h = jnp.dot(h.astype(w_ref.dtype), w_ref[...],
                        preferred_element_type=jnp.float32) + b_ref[...]
            h = jnp.where(h > 0, h, neg_slope * h)

        wm_ref, bm_ref = refs[idx], refs[idx + 1]
        wl_ref, bl_ref = refs[idx + 2], refs[idx + 3]
        hq = h.astype(wm_ref.dtype)
        mean_ref[...] = (jnp.dot(hq, wm_ref[...], preferred_element_type=jnp.float32)
                         + bm_ref[...]).astype(mean_ref.dtype)
        logvar_ref[...] = (jnp.dot(hq, wl_ref[...], preferred_element_type=jnp.float32)
                           + bl_ref[...]).astype(logvar_ref.dtype)

    return kernel


# ---------------------------------------------------------------------------
# Wrapper
# ---------------------------------------------------------------------------
def task_decoder_probabilistic_forward(latent_state, params, num_layers, *,
                                       tile_rows=2048,
                                       compute_dtype=jnp.bfloat16):
    """Pallas forward pass of TaskDecoderProbabilistic.

    latent_state: (..., latent_dim)
    params: dict with w{i}/b{i} (weights stored (in, out) == torch W.T) and
            w_mean/b_mean, w_logvar/b_logvar.
    Returns (mean, logvar), each (..., output_dim), float32.
    """
    lead_shape = latent_state.shape[:-1]
    latent_dim = latent_state.shape[-1]
    x = latent_state.reshape(-1, latent_dim)
    rows = x.shape[0]

    # MXU operands (x, W) in compute_dtype; biases / accumulation stay f32.
    ws = [params[f"w{i}"].astype(compute_dtype) for i in range(num_layers)]
    bs = [params[f"b{i}"].reshape(1, -1).astype(jnp.float32) for i in range(num_layers)]
    wm = params["w_mean"].astype(compute_dtype)
    bm = params["b_mean"].reshape(1, -1).astype(jnp.float32)
    wl = params["w_logvar"].astype(compute_dtype)
    bl = params["b_logvar"].reshape(1, -1).astype(jnp.float32)
    out_dim = int(wm.shape[1])

    # ---- row tiling ---------------------------------------------------------
    # Pad rows only to a sublane multiple; last grid step may be a partial
    # (masked) tile rather than padding rows up to a full tile.
    rows_p = max(_pad_to(rows, SUBLANE), SUBLANE)
    tm = min(_pad_to(tile_rows, SUBLANE), rows_p)
    # Keep >= 2 grid steps so v7x's two TensorCores both get work; per-step
    # overhead (~0.35 us) is negligible on single-TC v5e/v6e.
    if rows_p >= 2 * SUBLANE:
        tm = min(tm, _pad_to(pl.cdiv(rows_p, 2), SUBLANE))
    grid = (pl.cdiv(rows_p, tm),)

    if rows_p != rows:
        x = jnp.pad(x, ((0, rows_p - rows), (0, 0)))
    x = x.astype(compute_dtype)

    layer_ws = ws + [wm, wl]
    layer_bs = bs + [bm, bl]

    inputs = [x]
    in_specs = [pl.BlockSpec((tm, latent_dim), lambda i: (i, 0))]
    for w, b in zip(layer_ws, layer_bs):
        inputs += [w, b]
        # Constant index_map -> weight/bias blocks stay VMEM-resident across steps.
        in_specs += [pl.BlockSpec(tuple(w.shape), lambda i: (0, 0)),
                     pl.BlockSpec(tuple(b.shape), lambda i: (0, 0))]

    # ---- advisory cost (useful traffic only) --------------------------------
    head_k = int(ws[-1].shape[1]) if ws else latent_dim
    flops = 2 * rows * (sum(int(w.shape[0]) * int(w.shape[1]) for w in ws)
                        + 2 * head_k * out_dim)
    itemsize = jnp.dtype(compute_dtype).itemsize
    param_bytes = sum(int(a.size) * a.dtype.itemsize for a in layer_ws + layer_bs)
    bytes_accessed = (rows * latent_dim * itemsize
                      + param_bytes
                      + 2 * rows * out_dim * 4)

    # ---- VMEM estimate; only raise the scoped limit if we'd approach v5e's
    # 16 MiB default (only relevant for very large tile_rows sweeps). ---------
    widths = [latent_dim] + [int(w.shape[1]) for w in ws] + [out_dim]
    max_w = max(widths)
    est_vmem = (2 * tm * latent_dim * itemsize          # double-buffered input tile
                + 2 * 2 * tm * out_dim * 4              # double-buffered mean/logvar
                + param_bytes                           # resident weights/biases
                + 4 * tm * max_w * 4)                   # live intermediate headroom
    cp_kwargs = dict(dimension_semantics=("parallel",))
    if est_vmem > 12 * 1024 * 1024:
        cp_kwargs["vmem_limit_bytes"] = min(int(est_vmem * 2), 96 * 1024 * 1024)

    mean_p, logvar_p = pl.pallas_call(
        _make_decoder_kernel(num_layers),
        out_shape=(jax.ShapeDtypeStruct((rows_p, out_dim), jnp.float32),
                   jax.ShapeDtypeStruct((rows_p, out_dim), jnp.float32)),
        grid=grid,
        in_specs=in_specs,
        out_specs=(pl.BlockSpec((tm, out_dim), lambda i: (i, 0)),
                   pl.BlockSpec((tm, out_dim), lambda i: (i, 0))),
        compiler_params=pltpu.CompilerParams(**cp_kwargs),
        cost_estimate=pl.CostEstimate(flops=int(flops), transcendentals=0,
                                      bytes_accessed=int(bytes_accessed)),
    )(*inputs)

    if rows_p != rows:
        mean_p = mean_p[:rows]
        logvar_p = logvar_p[:rows]
    mean = mean_p.reshape(*lead_shape, out_dim)
    logvar = logvar_p.reshape(*lead_shape, out_dim)
    return mean, logvar


# ---------------------------------------------------------------------------
# Deterministic parameter init (PyTorch nn.Linear-style uniform bounds).
# Weights stored directly as (in, out) == torch W.T
# ---------------------------------------------------------------------------
def init_params(key, latent_dim, layers, output_dim):
    dims = [latent_dim] + list(layers)
    params = {}

    def linear_init(k, fan_in, fan_out):
        kw, kb = jax.random.split(k)
        bound = 1.0 / math.sqrt(fan_in)
        w = jax.random.uniform(kw, (fan_in, fan_out), jnp.float32, -bound, bound)
        b = jax.random.uniform(kb, (fan_out,), jnp.float32, -bound, bound)
        return w, b

    keys = jax.random.split(key, len(layers) + 2)
    for i in range(len(layers)):
        w, b = linear_init(keys[i], dims[i], dims[i + 1])
        params[f"w{i}"] = w
        params[f"b{i}"] = b

    w, b = linear_init(keys[len(layers)], dims[-1], output_dim)
    params["w_mean"], params["b_mean"] = w, b
    w, b = linear_init(keys[len(layers) + 1], dims[-1], output_dim)
    params["w_logvar"], params["b_logvar"] = w, b
    return params


# ---------------------------------------------------------------------------
# Pure-JAX reference (sanity check).
# ---------------------------------------------------------------------------
def reference_forward(latent_state, params, num_layers):
    h = latent_state.astype(jnp.float32)
    for i in range(num_layers):
        h = h @ params[f"w{i}"] + params[f"b{i}"]
        h = jnp.where(h > 0, h, 0.01 * h)
    mean = h @ params["w_mean"] + params["b_mean"]
    logvar = h @ params["w_logvar"] + params["b_logvar"]
    return mean, logvar


# TODO(synk): get_loss (Gaussian NLL) is a separate loss method, not part of forward();
# not implemented here.

if __name__ == "__main__":
    # config: pred_type='task_description', layers=[64, 32], latent_dim=32, task_dim=16
    layers = [64, 32]
    latent_dim = 32
    task_dim = 16

    key = jax.random.PRNGKey(0)
    k_param, k_x1, k_x2, k_x3 = jax.random.split(key, 4)
    params = init_params(k_param, latent_dim, layers, task_dim)

    # --- Test 1: small case, f32 exact semantics (grid splits into 2 steps) ---
    seq, batch = 8, 2
    latent_state = jax.random.normal(k_x1, (seq, batch, latent_dim), jnp.float32)
    mean, logvar = task_decoder_probabilistic_forward(
        latent_state, params, len(layers), compute_dtype=jnp.float32)
    mean = jax.block_until_ready(mean)
    logvar = jax.block_until_ready(logvar)
    mean_ref, logvar_ref = reference_forward(latent_state, params, len(layers))
    assert mean.shape == (seq, batch, task_dim)
    assert logvar.shape == (seq, batch, task_dim)
    assert jnp.allclose(mean, mean_ref, atol=1e-4, rtol=1e-5)
    assert jnp.allclose(logvar, logvar_ref, atol=1e-4, rtol=1e-5)

    # --- Test 2: larger case, default bf16 compute path (loose tolerances) ----
    latent_state2 = jax.random.normal(k_x2, (100, 4, latent_dim), jnp.float32)
    mean2, logvar2 = task_decoder_probabilistic_forward(
        latent_state2, params, len(layers))          # defaults: bf16, tile_rows=2048
    mean2 = jax.block_until_ready(mean2)
    logvar2 = jax.block_until_ready(logvar2)
    mean2_ref, logvar2_ref = reference_forward(latent_state2, params, len(layers))
    assert mean2.shape == (100, 4, task_dim)
    assert logvar2.shape == (100, 4, task_dim)
    assert jnp.allclose(mean2, mean2_ref, atol=5e-2, rtol=5e-2)
    assert jnp.allclose(logvar2, logvar2_ref, atol=5e-2, rtol=5e-2)

    # --- Test 3: odd row count, f32, small tile -> row padding + partial tile -
    latent_state3 = jax.random.normal(k_x3, (97, 3, latent_dim), jnp.float32)
    mean3, logvar3 = task_decoder_probabilistic_forward(
        latent_state3, params, len(layers), tile_rows=128, compute_dtype=jnp.float32)
    mean3 = jax.block_until_ready(mean3)
    logvar3 = jax.block_until_ready(logvar3)
    mean3_ref, logvar3_ref = reference_forward(latent_state3, params, len(layers))
    assert mean3.shape == (97, 3, task_dim)
    assert logvar3.shape == (97, 3, task_dim)
    assert jnp.allclose(mean3, mean3_ref, atol=1e-4, rtol=1e-5)
    assert jnp.allclose(logvar3, logvar3_ref, atol=1e-4, rtol=1e-5)

    print("KERNEL_OK")
</pallas_src>

<mosaic_0001>
module attributes {stable_mosaic.version = 11 : i64} {
  func.func @kernel(%arg0: i32, %arg1: memref<8x32xf32, #tpu.memory_space<vmem>>, %arg2: memref<32x64xf32, #tpu.memory_space<vmem>>, %arg3: memref<1x64xf32, #tpu.memory_space<vmem>>, %arg4: memref<64x32xf32, #tpu.memory_space<vmem>>, %arg5: memref<1x32xf32, #tpu.memory_space<vmem>>, %arg6: memref<32x16xf32, #tpu.memory_space<vmem>>, %arg7: memref<1x16xf32, #tpu.memory_space<vmem>>, %arg8: memref<32x16xf32, #tpu.memory_space<vmem>>, %arg9: memref<1x16xf32, #tpu.memory_space<vmem>>, %arg10: memref<8x16xf32, #tpu.memory_space<vmem>>, %arg11: memref<8x16xf32, #tpu.memory_space<vmem>>) attributes {dimension_semantics = [#tpu.dimension_semantics<parallel>], iteration_bounds = array<i64: 2>, scalar_prefetch = 0 : i64, scratch_operands = 0 : i64, tpu.core_type = #tpu.core_type<tc>, window_params = [{transform_indices = @transform_0, window_bounds = array<i64: 8, 32>}, {pipeline_mode = #tpu.pipeline_mode<synchronous>, transform_indices = @transform_1, window_bounds = array<i64: 32, 64>}, {pipeline_mode = #tpu.pipeline_mode<synchronous>, transform_indices = @transform_2, window_bounds = array<i64: 1, 64>}, {pipeline_mode = #tpu.pipeline_mode<synchronous>, transform_indices = @transform_3, window_bounds = array<i64: 64, 32>}, {pipeline_mode = #tpu.pipeline_mode<synchronous>, transform_indices = @transform_4, window_bounds = array<i64: 1, 32>}, {pipeline_mode = #tpu.pipeline_mode<synchronous>, transform_indices = @transform_5, window_bounds = array<i64: 32, 16>}, {pipeline_mode = #tpu.pipeline_mode<synchronous>, transform_indices = @transform_6, window_bounds = array<i64: 1, 16>}, {pipeline_mode = #tpu.pipeline_mode<synchronous>, transform_indices = @transform_7, window_bounds = array<i64: 32, 16>}, {pipeline_mode = #tpu.pipeline_mode<synchronous>, transform_indices = @transform_8, window_bounds = array<i64: 1, 16>}, {transform_indices = @transform_9, window_bounds = array<i64: 8, 16>}, {transform_indices = @transform_10, window_bounds = array<i64: 8, 16>}]} {
    %c0 = arith.constant 0 : index
    %c0_0 = arith.constant 0 : index
    %0 = vector.load %arg1[%c0, %c0_0] : memref<8x32xf32, #tpu.memory_space<vmem>>, vector<8x32xf32>
    %c0_1 = arith.constant 0 : index
    %c0_2 = arith.constant 0 : index
    %1 = vector.load %arg2[%c0_1, %c0_2] : memref<32x64xf32, #tpu.memory_space<vmem>>, vector<32x64xf32>
    %cst = arith.constant dense<0.000000e+00> : vector<8x64xf32>
    %2 = tpu.matmul %0, %1, %cst {dimension_numbers = #tpu.dot_dimension_numbers<[1], [0], [0], [1], [0, 0, 1, 1], [], []>} : vector<8x32xf32>, vector<32x64xf32>, vector<8x64xf32> -> vector<8x64xf32>
    %c0_3 = arith.constant 0 : index
    %c0_4 = arith.constant 0 : index
    %3 = vector.load %arg3[%c0_3, %c0_4] : memref<1x64xf32, #tpu.memory_space<vmem>>, vector<1x64xf32>
    %4 = vector.broadcast %3 : vector<1x64xf32> to vector<8x64xf32>
    %5 = arith.addf %2, %4 : vector<8x64xf32>
    %cst_5 = arith.constant 0.000000e+00 : f32
    %6 = vector.broadcast %cst_5 : f32 to vector<8x64xf32>
    %7 = arith.cmpf ogt, %5, %6 : vector<8x64xf32>
    %cst_6 = arith.constant 0.00999999977 : f32
    %8 = vector.broadcast %cst_6 : f32 to vector<8x64xf32>
    %9 = arith.mulf %8, %5 : vector<8x64xf32>
    %10 = arith.select %7, %5, %9 : vector<8x64xi1>, vector<8x64xf32>
    %c0_7 = arith.constant 0 : index
    %c0_8 = arith.constant 0 : index
    %11 = vector.load %arg4[%c0_7, %c0_8] : memref<64x32xf32, #tpu.memory_space<vmem>>, vector<64x32xf32>
    %cst_9 = arith.constant dense<0.000000e+00> : vector<8x32xf32>
    %12 = tpu.matmul %10, %11, %cst_9 {dimension_numbers = #tpu.dot_dimension_numbers<[1], [0], [0], [1], [0, 0, 1, 1], [], []>} : vector<8x64xf32>, vector<64x32xf32>, vector<8x32xf32> -> vector<8x32xf32>
    %c0_10 = arith.constant 0 : index
    %c0_11 = arith.constant 0 : index
    %13 = vector.load %arg5[%c0_10, %c0_11] : memref<1x32xf32, #tpu.memory_space<vmem>>, vector<1x32xf32>
    %14 = vector.broadcast %13 : vector<1x32xf32> to vector<8x32xf32>
    %15 = arith.addf %12, %14 : vector<8x32xf32>
    %cst_12 = arith.constant 0.000000e+00 : f32
    %16 = vector.broadcast %cst_12 : f32 to vector<8x32xf32>
    %17 = arith.cmpf ogt, %15, %16 : vector<8x32xf32>
    %cst_13 = arith.constant 0.00999999977 : f32
    %18 = vector.broadcast %cst_13 : f32 to vector<8x32xf32>
    %19 = arith.mulf %18, %15 : vector<8x32xf32>
    %20 = arith.select %17, %15, %19 : vector<8x32xi1>, vector<8x32xf32>
    %c0_14 = arith.constant 0 : index
    %c0_15 = arith.constant 0 : index
    %21 = vector.load %arg6[%c0_14, %c0_15] : memref<32x16xf32, #tpu.memory_space<vmem>>, vector<32x16xf32>
    %cst_16 = arith.constant dense<0.000000e+00> : vector<8x16xf32>
    %22 = tpu.matmul %20, %21, %cst_16 {dimension_numbers = #tpu.dot_dimension_numbers<[1], [0], [0], [1], [0, 0, 1, 1], [], []>} : vector<8x32xf32>, vector<32x16xf32>, vector<8x16xf32> -> vector<8x16xf32>
    %c0_17 = arith.constant 0 : index
    %c0_18 = arith.constant 0 : index
    %23 = vector.load %arg7[%c0_17, %c0_18] : memref<1x16xf32, #tpu.memory_space<vmem>>, vector<1x16xf32>
    %24 = vector.broadcast %23 : vector<1x16xf32> to vector<8x16xf32>
    %25 = arith.addf %22, %24 : vector<8x16xf32>
    %c0_19 = arith.constant 0 : index
    %c0_20 = arith.constant 0 : index
    %26 = vector.load %arg10[%c0_19, %c0_20] : memref<8x16xf32, #tpu.memory_space<vmem>>, vector<8x16xf32>
    tpu.vector_store %arg10[%c0_19, %c0_20], %25 {strides = array<i32>} : memref<8x16xf32, #tpu.memory_space<vmem>>, vector<8x16xf32>,
    %c0_21 = arith.constant 0 : index
    %c0_22 = arith.constant 0 : index
    %27 = vector.load %arg8[%c0_21, %c0_22] : memref<32x16xf32, #tpu.memory_space<vmem>>, vector<32x16xf32>
    %cst_23 = arith.constant dense<0.000000e+00> : vector<8x16xf32>
    %28 = tpu.matmul %20, %27, %cst_23 {dimension_numbers = #tpu.dot_dimension_numbers<[1], [0], [0], [1], [0, 0, 1, 1], [], []>} : vector<8x32xf32>, vector<32x16xf32>, vector<8x16xf32> -> vector<8x16xf32>
    %c0_24 = arith.constant 0 : index
    %c0_25 = arith.constant 0 : index
    %29 = vector.load %arg9[%c0_24, %c0_25] : memref<1x16xf32, #tpu.memory_space<vmem>>, vector<1x16xf32>
    %30 = vector.broadcast %29 : vector<1x16xf32> to vector<8x16xf32>
    %31 = arith.addf %28, %30 : vector<8x16xf32>
    %c0_26 = arith.constant 0 : index
    %c0_27 = arith.constant 0 : index
    %32 = vector.load %arg11[%c0_26, %c0_27] : memref<8x16xf32, #tpu.memory_space<vmem>>, vector<8x16xf32>
    tpu.vector_store %arg11[%c0_26, %c0_27], %31 {strides = array<i32>} : memref<8x16xf32, #tpu.memory_space<vmem>>, vector<8x16xf32>,
    return
  }
  func.func @transform_0(%arg0: i32) -> (i32, i32) {
    %c0_i32 = arith.constant 0 : i32
    %c0_i32_0 = arith.constant 0 : i32
    return %arg0, %c0_i32 : i32, i32
  }
  func.func @transform_1(%arg0: i32) -> (i32, i32) {
    %c0_i32 = arith.constant 0 : i32
    %c0_i32_0 = arith.constant 0 : i32
    %c0_i32_1 = arith.constant 0 : i32
    return %c0_i32, %c0_i32_0 : i32, i32
  }
  func.func @transform_2(%arg0: i32) -> (i32, i32) {
    %c0_i32 = arith.constant 0 : i32
    %c0_i32_0 = arith.constant 0 : i32
    %c0_i32_1 = arith.constant 0 : i32
    return %c0_i32, %c0_i32_0 : i32, i32
  }
  func.func @transform_3(%arg0: i32) -> (i32, i32) {
    %c0_i32 = arith.constant 0 : i32
    %c0_i32_0 = arith.constant 0 : i32
    %c0_i32_1 = arith.constant 0 : i32
    return %c0_i32, %c0_i32_0 : i32, i32
  }
  func.func @transform_4(%arg0: i32) -> (i32, i32) {
    %c0_i32 = arith.constant 0 : i32
    %c0_i32_0 = arith.constant 0 : i32
    %c0_i32_1 = arith.constant 0 : i32
    return %c0_i32, %c0_i32_0 : i32, i32
  }
  func.func @transform_5(%arg0: i32) -> (i32, i32) {
    %c0_i32 = arith.constant 0 : i32
    %c0_i32_0 = arith.constant 0 : i32
    %c0_i32_1 = arith.constant 0 : i32
    return %c0_i32, %c0_i32_0 : i32, i32
  }
  func.func @transform_6(%arg0: i32) -> (i32, i32) {
    %c0_i32 = arith.constant 0 : i32
    %c0_i32_0 = arith.constant 0 : i32
    %c0_i32_1 = arith.constant 0 : i32
    return %c0_i32, %c0_i32_0 : i32, i32
  }
  func.func @transform_7(%arg0: i32) -> (i32, i32) {
    %c0_i32 = arith.constant 0 : i32
    %c0_i32_0 = arith.constant 0 : i32
    %c0_i32_1 = arith.constant 0 : i32
    return %c0_i32, %c0_i32_0 : i32, i32
  }
  func.func @transform_8(%arg0: i32) -> (i32, i32) {
    %c0_i32 = arith.constant 0 : i32
    %c0_i32_0 = arith.constant 0 : i32
    %c0_i32_1 = arith.constant 0 : i32
    return %c0_i32, %c0_i32_0 : i32, i32
  }
  func.func @transform_9(%arg0: i32) -> (i32, i32) {
    %c0_i32 = arith.constant 0 : i32
    %c0_i32_0 = arith.constant 0 : i32
    return %arg0, %c0_i32 : i32, i32
  }
  func.func @transform_10(%arg0: i32) -> (i32, i32) {
    %c0_i32 = arith.constant 0 : i32
    %c0_i32_0 = arith.constant 0 : i32
    return %arg0, %c0_i32 : i32, i32
  }
}

</mosaic_0001>

<llo_original>
// kernel: tpu_custom_call.1
$region0: #{tpu_custom_call.1}
  #allocation0 [shape = 'u32[]', space=smem, size = 0x4, offset = 0x4, fixed_abs, tag = 'smem constant byte address 0x4 - core index']
  #allocation1 [shape = 'u32[144,128]{1,0:T(1,128)}', space=vmem, size = 0x12000, scoped, tag = 'internal scratch']
  %s0 = inlined_call_operand.vmem [shape: f32[16,32], index: 0, kind: input, shape index: {}]
  %s1 = inlined_call_operand.vmem [shape: f32[32,64], index: 1, kind: input, shape index: {}]
  %s2 = inlined_call_operand.vmem [shape: f32[1,64], index: 2, kind: input, shape index: {}]
  %s3 = inlined_call_operand.vmem [shape: f32[64,32], index: 3, kind: input, shape index: {}]
  %s4 = inlined_call_operand.vmem [shape: f32[1,32], index: 4, kind: input, shape index: {}]
  %s5 = inlined_call_operand.vmem [shape: f32[32,16], index: 5, kind: input, shape index: {}]
  %s6 = inlined_call_operand.vmem [shape: f32[1,16], index: 6, kind: input, shape index: {}]
  %s7 = inlined_call_operand.vmem [shape: f32[32,16], index: 7, kind: input, shape index: {}]
  %s8 = inlined_call_operand.vmem [shape: f32[1,16], index: 8, kind: input, shape index: {}]
  %s9 = inlined_call_operand.hbm [shape: f32[16,16], index: 9, kind: output, shape index: {0}]
  %s10 = inlined_call_operand.hbm [shape: f32[16,16], index: 10, kind: output, shape index: {1}]
  %11 = xla_tuple %s9, %s10
  %s12 = sld [smem:[#allocation0]]
  $region77: #{tpu_custom_call.1} parent=0
    _
  %s14 = ssub.s32 1, %s12
  %s15 = scalar_select 0, %s14, %s12
  $region1: #{tpu_custom_call.1} parent=0
    #allocation2 [shape = 'u8[8192]{0}', space=vmem, size = 0x2000, scoped, tag = 'output window, operand 0']
    #allocation3 [shape = 's32[2]{0}', space=sflag, size = 0x8, scoped, tag = 'scoped memory for tpu_custom_call.1']
    #allocation4 [shape = 'u8[8192]{0}', space=vmem, size = 0x2000, scoped, tag = 'output window, operand 1']
    #allocation5 [shape = 's32[2]{0}', space=sflag, size = 0x8, scoped, tag = 'scoped memory for tpu_custom_call.1']
    %16 = vsyncpa [#allocation3], 0
    %s17 = scalar_lea.sflag [#allocation3], 1
    %18 = vsyncpa %s17, 0
    %19 = vsyncpa [#allocation5], 0
    %s20 = scalar_lea.sflag [#allocation5], 1
    %21 = vsyncpa %s20, 0
    loop: start=0, step=1, limit=4
    $region2: #{tpu_custom_call.1} parent=1 // loop_pre_header
      _
    $region3: #{tpu_custom_call.1} parent=1 // loop_header
      %s23 = sphi 0, %s27
      %p24 = scmp.ge.s32.totalorder %s23, 4
      %s33 = sphi 0, %s35
      %s36 = sphi 0, %s33
      %s37 = sphi 0, %s36
      %s53 = sphi 0, %s37
      %s57 = sphi 0, %s57
      %s59 = sphi 0, %s57
      %s60 = sphi 0, %s59
      %s74 = sphi 0, %s60
      %s78 = sphi 0, %s78
      %s80 = sphi 0, %s78
      %s81 = sphi 0, %s80
      %s95 = sphi 0, %s81
      %s99 = sphi 0, %s99
      %s101 = sphi 0, %s99
      %s102 = sphi 0, %s101
      %s116 = sphi 0, %s102
      %s120 = sphi 0, %s120
      %s122 = sphi 0, %s120
      %s123 = sphi 0, %s122
      %s137 = sphi 0, %s123
      %s141 = sphi 0, %s141
      %s143 = sphi 0, %s141
      %s144 = sphi 0, %s143
      %s158 = sphi 0, %s144
      %s162 = sphi 0, %s162
      %s164 = sphi 0, %s162
      %s165 = sphi 0, %s164
      %s179 = sphi 0, %s165
      %s183 = sphi 0, %s183
      %s185 = sphi 0, %s183
      %s186 = sphi 0, %s185
      %s200 = sphi 0, %s186
      %s204 = sphi 0, %s204
      %s206 = sphi 0, %s204
      %s207 = sphi 0, %s206
      %s221 = sphi 0, %s207
      %s227 = sphi 0, %s229
      %s230 = sphi 0, %s227
      %s231 = sphi 0, %s230
      %s247 = sphi 0, %s231
      %s253 = sphi 0, %s255
      %s256 = sphi 0, %s253
      %s257 = sphi 0, %s256
      %s273 = sphi 0, %s257
    $region4: #{tpu_custom_call.1} parent=1 // loop_header_branch
      %26 = sbr.rel (%p24) target = $region8
    $region5: #{tpu_custom_call.1} parent=1 // loop_body
      %s28 = ssub.s32 %s23, 1
      %s29 = ssub.s32 %s23, 2
      %s30 = sadd.s32 %s23, 1
      %s31 = ssub.s32 %s23, %s30
      %p32 = scmp.eq.s32.totalorder %s31, 0
      %s34 = sadd.s32 %s33, 1
      %s35 = scalar_select %p32, %s33, %s34
      %p38 = pneg %p32
      %p39 = scmp.eq.s32.totalorder %s23, 1
      %p40 = por %p38, %p39
      %p41 = scmp.ne.s32.totalorder %s33, %s36
      %p42 = scmp.eq.s32.totalorder %s23, 0
      %p43 = por %p41, %p42
      %p44 = scmp.ne.s32.totalorder %s33, %s36
      %p45 = scmp.eq.s32.totalorder %s28, 1
      %p46 = por %p44, %p45
      %p47 = scmp.ne.s32.totalorder %s36, %s37
      %p48 = scmp.eq.s32.totalorder %s28, 0
      %p49 = por %p47, %p48
      %p50 = scmp.ne.s32.totalorder %s36, %s37
      %p51 = scmp.eq.s32.totalorder %s29, 1
      %p52 = por %p50, %p51
      %p54 = scmp.ne.s32.totalorder %s37, %s53
      %p55 = scmp.eq.s32.totalorder %s29, 0
      %p56 = por %p54, %p55
      %s58 = sadd.s32 %s57, 1
      %p61 = scmp.eq.s32.totalorder %s23, 1
      %p62 = scmp.ne.s32.totalorder %s57, %s59
      %p63 = scmp.eq.s32.totalorder %s23, 0
      %p64 = por %p62, %p63
      %p65 = scmp.ne.s32.totalorder %s57, %s59
      %p66 = scmp.eq.s32.totalorder %s28, 1
      %p67 = por %p65, %p66
      %p68 = scmp.ne.s32.totalorder %s59, %s60
      %p69 = scmp.eq.s32.totalorder %s28, 0
      %p70 = por %p68, %p69
      %p71 = scmp.ne.s32.totalorder %s59, %s60
      %p72 = scmp.eq.s32.totalorder %s29, 1
      %p73 = por %p71, %p72
      %p75 = scmp.ne.s32.totalorder %s60, %s74
      %p76 = scmp.eq.s32.totalorder %s29, 0
      %p77 = por %p75, %p76
      %s79 = sadd.s32 %s78, 1
      %p82 = scmp.eq.s32.totalorder %s23, 1
      %p83 = scmp.ne.s32.totalorder %s78, %s80
      %p84 = scmp.eq.s32.totalorder %s23, 0
      %p85 = por %p83, %p84
      %p86 = scmp.ne.s32.totalorder %s78, %s80
      %p87 = scmp.eq.s32.totalorder %s28, 1
      %p88 = por %p86, %p87
      %p89 = scmp.ne.s32.totalorder %s80, %s81
      %p90 = scmp.eq.s32.totalorder %s28, 0
      %p91 = por %p89, %p90
      %p92 = scmp.ne.s32.totalorder %s80, %s81
      %p93 = scmp.eq.s32.totalorder %s29, 1
      %p94 = por %p92, %p93
      %p96 = scmp.ne.s32.totalorder %s81, %s95
      %p97 = scmp.eq.s32.totalorder %s29, 0
      %p98 = por %p96, %p97
      %s100 = sadd.s32 %s99, 1
      %p103 = scmp.eq.s32.totalorder %s23, 1
      %p104 = scmp.ne.s32.totalorder %s99, %s101
      %p105 = scmp.eq.s32.totalorder %s23, 0
      %p106 = por %p104, %p105
      %p107 = scmp.ne.s32.totalorder %s99, %s101
      %p108 = scmp.eq.s32.totalorder %s28, 1
      %p109 = por %p107, %p108
      %p110 = scmp.ne.s32.totalorder %s101, %s102
      %p111 = scmp.eq.s32.totalorder %s28, 0
      %p112 = por %p110, %p111
      %p113 = scmp.ne.s32.totalorder %s101, %s102
      %p114 = scmp.eq.s32.totalorder %s29, 1
      %p115 = por %p113, %p114
      %p117 = scmp.ne.s32.totalorder %s102, %s116
      %p118 = scmp.eq.s32.totalorder %s29, 0
      %p119 = por %p117, %p118
      %s121 = sadd.s32 %s120, 1
      %p124 = scmp.eq.s32.totalorder %s23, 1
      %p125 = scmp.ne.s32.totalorder %s120, %s122
      %p126 = scmp.eq.s32.totalorder %s23, 0
      %p127 = por %p125, %p126
      %p128 = scmp.ne.s32.totalorder %s120, %s122
      %p129 = scmp.eq.s32.totalorder %s28, 1
      %p130 = por %p128, %p129
      %p131 = scmp.ne.s32.totalorder %s122, %s123
      %p132 = scmp.eq.s32.totalorder %s28, 0
      %p133 = por %p131, %p132
      %p134 = scmp.ne.s32.totalorder %s122, %s123
      %p135 = scmp.eq.s32.totalorder %s29, 1
      %p136 = por %p134, %p135
      %p138 = scmp.ne.s32.totalorder %s123, %s137
      %p139 = scmp.eq.s32.totalorder %s29, 0
      %p140 = por %p138, %p139
      %s142 = sadd.s32 %s141, 1
      %p145 = scmp.eq.s32.totalorder %s23, 1
      %p146 = scmp.ne.s32.totalorder %s141, %s143
      %p147 = scmp.eq.s32.totalorder %s23, 0
      %p148 = por %p146, %p147
      %p149 = scmp.ne.s32.totalorder %s141, %s143
      %p150 = scmp.eq.s32.totalorder %s28, 1
      %p151 = por %p149, %p150
      %p152 = scmp.ne.s32.totalorder %s143, %s144
      %p153 = scmp.eq.s32.totalorder %s28, 0
      %p154 = por %p152, %p153
      %p155 = scmp.ne.s32.totalorder %s143, %s144
      %p156 = scmp.eq.s32.totalorder %s29, 1
      %p157 = por %p155, %p156
      %p159 = scmp.ne.s32.totalorder %s144, %s158
      %p160 = scmp.eq.s32.totalorder %s29, 0
      %p161 = por %p159, %p160
      %s163 = sadd.s32 %s162, 1
      %p166 = scmp.eq.s32.totalorder %s23, 1
      %p167 = scmp.ne.s32.totalorder %s162, %s164
      %p168 = scmp.eq.s32.totalorder %s23, 0
      %p169 = por %p167, %p168
      %p170 = scmp.ne.s32.totalorder %s162, %s164
      %p171 = scmp.eq.s32.totalorder %s28, 1
      %p172 = por %p170, %p171
      %p173 = scmp.ne.s32.totalorder %s164, %s165
      %p174 = scmp.eq.s32.totalorder %s28, 0
      %p175 = por %p173, %p174
      %p176 = scmp.ne.s32.totalorder %s164, %s165
      %p177 = scmp.eq.s32.totalorder %s29, 1
      %p178 = por %p176, %p177
      %p180 = scmp.ne.s32.totalorder %s165, %s179
      %p181 = scmp.eq.s32.totalorder %s29, 0
      %p182 = por %p180, %p181
      %s184 = sadd.s32 %s183, 1
      %p187 = scmp.eq.s32.totalorder %s23, 1
      %p188 = scmp.ne.s32.totalorder %s183, %s185
      %p189 = scmp.eq.s32.totalorder %s23, 0
      %p190 = por %p188, %p189
      %p191 = scmp.ne.s32.totalorder %s183, %s185
      %p192 = scmp.eq.s32.totalorder %s28, 1
      %p193 = por %p191, %p192
      %p194 = scmp.ne.s32.totalorder %s185, %s186
      %p195 = scmp.eq.s32.totalorder %s28, 0
      %p196 = por %p194, %p195
      %p197 = scmp.ne.s32.totalorder %s185, %s186
      %p198 = scmp.eq.s32.totalorder %s29, 1
      %p199 = por %p197, %p198
      %p201 = scmp.ne.s32.totalorder %s186, %s200
      %p202 = scmp.eq.s32.totalorder %s29, 0
      %p203 = por %p201, %p202
      %s205 = sadd.s32 %s204, 1
      %p208 = scmp.eq.s32.totalorder %s23, 1
      %p209 = scmp.ne.s32.totalorder %s204, %s206
      %p210 = scmp.eq.s32.totalorder %s23, 0
      %p211 = por %p209, %p210
      %p212 = scmp.ne.s32.totalorder %s204, %s206
      %p213 = scmp.eq.s32.totalorder %s28, 1
      %p214 = por %p212, %p213
      %p215 = scmp.ne.s32.totalorder %s206, %s207
      %p216 = scmp.eq.s32.totalorder %s28, 0
      %p217 = por %p215, %p216
      %p218 = scmp.ne.s32.totalorder %s206, %s207
      %p219 = scmp.eq.s32.totalorder %s29, 1
      %p220 = por %p218, %p219
      %p222 = scmp.ne.s32.totalorder %s207, %s221
      %p223 = scmp.eq.s32.totalorder %s29, 0
      %p224 = por %p222, %p223
      %s225 = ssub.s32 %s23, %s30
      %p226 = scmp.eq.s32.totalorder %s225, 0
      %s228 = sadd.s32 %s227, 1
      %s229 = scalar_select %p226, %s227, %s228
      %p232 = pneg %p226
      %p233 = scmp.eq.s32.totalorder %s23, 1
      %p234 = por %p232, %p233
      %p235 = scmp.ne.s32.totalorder %s227, %s230
      %p236 = scmp.eq.s32.totalorder %s23, 0
      %p237 = por %p235, %p236
      %p238 = scmp.ne.s32.totalorder %s227, %s230
      %p239 = scmp.eq.s32.totalorder %s28, 1
      %p240 = por %p238, %p239
      %p241 = scmp.ne.s32.totalorder %s230, %s231
      %p242 = scmp.eq.s32.totalorder %s28, 0
      %p243 = por %p241, %p242
      %p244 = scmp.ne.s32.totalorder %s230, %s231
      %p245 = scmp.eq.s32.totalorder %s29, 1
      %p246 = por %p244, %p245
      %p248 = scmp.ne.s32.totalorder %s231, %s247
      %p249 = scmp.eq.s32.totalorder %s29, 0
      %p250 = por %p248, %p249
      %s251 = ssub.s32 %s23, %s30
      %p252 = scmp.eq.s32.totalorder %s251, 0
      %s254 = sadd.s32 %s253, 1
      %s255 = scalar_select %p252, %s253, %s254
      %p258 = pneg %p252
      %p259 = scmp.eq.s32.totalorder %s23, 1
      %p260 = por %p258, %p259
      %p261 = scmp.ne.s32.totalorder %s253, %s256
      %p262 = scmp.eq.s32.totalorder %s23, 0
      %p263 = por %p261, %p262
      %p264 = scmp.ne.s32.totalorder %s253, %s256
      %p265 = scmp.eq.s32.totalorder %s28, 1
      %p266 = por %p264, %p265
      %p267 = scmp.ne.s32.totalorder %s256, %s257
      %p268 = scmp.eq.s32.totalorder %s28, 0
      %p269 = por %p267, %p268
      %p270 = scmp.ne.s32.totalorder %s256, %s257
      %p271 = scmp.eq.s32.totalorder %s29, 1
      %p272 = por %p270, %p271
      %p274 = scmp.ne.s32.totalorder %s257, %s273
      %p275 = scmp.eq.s32.totalorder %s29, 0
      %p276 = por %p274, %p275
      %p277 = scmp.le.s32.totalorder 1, %s23
      %p278 = scmp.lt.s32.totalorder %s23, 3
      %p279 = pnand %p277, %p278
      %p280 = pneg %p279
      // Predicated region
      $region9: #{tpu_custom_call.1} parent=5 // pred_check
        _
      $region10: #{tpu_custom_call.1} parent=5 // pred_check_branch
        %282 = sbr.rel (%p279) target = $region12
      $region11: #{tpu_custom_call.1} parent=5 // pred_region
        %s283 = ssub.s32 %s23, 1
        // Predicated region
        $region13: #{tpu_custom_call.1} parent=11 // pred_check
          %p284 = pneg %p70
        $region14: #{tpu_custom_call.1} parent=11 // pred_check_branch
          %286 = sbr.rel (%p284) target = $region16
        $region15: #{tpu_custom_call.1} parent=11 // pred_region
          _
        $region16: #{tpu_custom_call.1} parent=11 // pred_fallthru
          _
        // Predicated region
        $region17: #{tpu_custom_call.1} parent=11 // pred_check
          %p287 = pneg %p91
        $region18: #{tpu_custom_call.1} parent=11 // pred_check_branch
          %289 = sbr.rel (%p287) target = $region20
        $region19: #{tpu_custom_call.1} parent=11 // pred_region
          _
        $region20: #{tpu_custom_call.1} parent=11 // pred_fallthru
          _
        // Predicated region
        $region21: #{tpu_custom_call.1} parent=11 // pred_check
          %p290 = pneg %p112
        $region22: #{tpu_custom_call.1} parent=11 // pred_check_branch
          %292 = sbr.rel (%p290) target = $region24
        $region23: #{tpu_custom_call.1} parent=11 // pred_region
          _
        $region24: #{tpu_custom_call.1} parent=11 // pred_fallthru
          _
        // Predicated region
        $region25: #{tpu_custom_call.1} parent=11 // pred_check
          %p293 = pneg %p133
        $region26: #{tpu_custom_call.1} parent=11 // pred_check_branch
          %295 = sbr.rel (%p293) target = $region28
        $region27: #{tpu_custom_call.1} parent=11 // pred_region
          _
        $region28: #{tpu_custom_call.1} parent=11 // pred_fallthru
          _
        // Predicated region
        $region29: #{tpu_custom_call.1} parent=11 // pred_check
          %p296 = pneg %p154
        $region30: #{tpu_custom_call.1} parent=11 // pred_check_branch
          %298 = sbr.rel (%p296) target = $region32
        $region31: #{tpu_custom_call.1} parent=11 // pred_region
          _
        $region32: #{tpu_custom_call.1} parent=11 // pred_fallthru
          _
        // Predicated region
        $region33: #{tpu_custom_call.1} parent=11 // pred_check
          %p299 = pneg %p175
        $region34: #{tpu_custom_call.1} parent=11 // pred_check_branch
          %301 = sbr.rel (%p299) target = $region36
        $region35: #{tpu_custom_call.1} parent=11 // pred_region
          _
        $region36: #{tpu_custom_call.1} parent=11 // pred_fallthru
          _
        // Predicated region
        $region37: #{tpu_custom_call.1} parent=11 // pred_check
          %p302 = pneg %p196
        $region38: #{tpu_custom_call.1} parent=11 // pred_check_branch
          %304 = sbr.rel (%p302) target = $region40
        $region39: #{tpu_custom_call.1} parent=11 // pred_region
          _
        $region40: #{tpu_custom_call.1} parent=11 // pred_fallthru
          _
        // Predicated region
        $region41: #{tpu_custom_call.1} parent=11 // pred_check
          %p305 = pneg %p217
        $region42: #{tpu_custom_call.1} parent=11 // pred_check_branch
          %307 = sbr.rel (%p305) target = $region44
        $region43: #{tpu_custom_call.1} parent=11 // pred_region
          _
        $region44: #{tpu_custom_call.1} parent=11 // pred_fallthru
          _
      $region12: #{tpu_custom_call.1} parent=5 // pred_fallthru
        _
      %p308 = scmp.lt.s32.totalorder %s23, 2
      // Predicated region
      $region45: #{tpu_custom_call.1} parent=5 // pred_check
        %p309 = pneg %p308
      $region46: #{tpu_custom_call.1} parent=5 // pred_check_branch
        %311 = sbr.rel (%p309) target = $region48
      $region47: #{tpu_custom_call.1} parent=5 // pred_region
        // Predicated region
        $region49: #{tpu_custom_call.1} parent=47 // pred_check
          %p312 = pneg %p43
        $region50: #{tpu_custom_call.1} parent=47 // pred_check_branch
          %314 = sbr.rel (%p312) target = $region52
        $region51: #{tpu_custom_call.1} parent=47 // pred_region
          %p315 = scmp.lt.s32.totalorder %s23, 1
          %s316 = scalar_select %p315, %s23, 1
          %s317 = smul.addr %s316, 8
          %s318 = scalar_lea.vmem %s0, %s317
        $region52: #{tpu_custom_call.1} parent=47 // pred_fallthru
          _
      $region48: #{tpu_custom_call.1} parent=5 // pred_fallthru
        _
      %p319 = scmp.le.s32.totalorder 1, %s23
      %p320 = scmp.lt.s32.totalorder %s23, 3
      %p321 = pnand %p319, %p320
      %p322 = pneg %p321
      // Predicated region
      $region53: #{tpu_custom_call.1} parent=5 // pred_check
        _
      $region54: #{tpu_custom_call.1} parent=5 // pred_check_branch
        %324 = sbr.rel (%p321) target = $region56
      $region55: #{tpu_custom_call.1} parent=5 // pred_region
        %s325 = ssub.s32 %s23, 1
        %p326 = scmp.lt.s32.totalorder %s28, 1
        %s327 = scalar_select %p326, %s28, 1
        %s328 = smul.addr %s327, 8
        %s329 = scalar_lea.vmem %s0, %s328
        %p330 = pneg %p49
        %p331 = pneg %p46
        %p332 = pneg %p70
        %p333 = pneg %p67
        %p334 = pneg %p91
        %p335 = pneg %p88
        %p336 = pneg %p112
        %p337 = pneg %p109
        %p338 = pneg %p133
        %p339 = pneg %p130
        %p340 = pneg %p154
        %p341 = pneg %p151
        %p342 = pneg %p175
        %p343 = pneg %p172
        %p344 = pneg %p196
        %p345 = pneg %p193
        %p346 = pneg %p217
        %p347 = pneg %p214
        %p348 = pneg %p243
        %p349 = pneg %p240
        %s350 = sand.u32 %s230, 1
        %s351 = scalar_lea.sflag [#allocation3], %s350
        %s352 = sand.u32 %s230, 1
        %s353 = smul.addr %s352, 8
        %s354 = scalar_lea.vmem [#allocation2], %s353
        %p355 = pneg %p269
        %p356 = pneg %p266
        %s357 = sand.u32 %s256, 1
        %s358 = scalar_lea.sflag [#allocation5], %s357
        %s359 = sand.u32 %s256, 1
        %s360 = smul.addr %s359, 8
        %s361 = scalar_lea.vmem [#allocation4], %s360
        %p362 = scmp.lt.s32.totalorder %s28, 1
        %s363 = scalar_select %p362, %s28, 1
        %s364 = smul.addr %s363, 8
        %s365 = scalar_lea.vmem %s0, %s364
        %v366 = vld [vmem:[%s365] sm:$0xff]
        %v367 = vld [vmem:[%s1] sm:$0xff]
        %v368 = vld [vmem:[%s1 + $0x8] sm:$0xff]
        %v369 = vld [vmem:[%s1 + $0x10] sm:$0xff]
        %v370 = vld [vmem:[%s1 + $0x18] sm:$0xff]
        %v371 = vld [vmem:[%s2] sm:$0x1]
        %v373 = vlaneseq
        %v374 = vshrl.u32 %v373, 7
        %v375 = vsub.s32 0, %v374
        %v376 = vrot.slane %v371, %v375
        %vm378 = vcmask 261120
        %v380 = vsel %vm378, %v366, 0
        %382 = vmatprep.subr.mxu0 0.0
        %383 = vmatpush1.msra.mxu0 %v367
        %384 = vmatprep.subr.mxu0 0.0
        %385 = vmatpush1.msra.mxu0 %v368
        %386 = vmatprep.subr.mxu0 0.0
        %387 = vmatpush1.msra.mxu0 %v369
        %388 = vmatprep.subr.mxu0 0.0
        %389 = vmatpush1.msra.mxu0 %v370
        %390 = vmatprep.subr.mxu0 0.0
        %391 = vmatpush1.msra.mxu0 0.0
        %392 = vmatprep.subr.mxu0 0.0
        %393 = vmatpush1.msra.mxu0 0.0
        %394 = vmatprep.subr.mxu0 0.0
        %395 = vmatpush1.msra.mxu0 0.0
        %396 = vmatprep.subr.mxu0 0.0
        %397 = vmatpush1.msra.mxu0 0.0
        %398 = vmatprep.subr.mxu0 0.0
        %399 = vmatpush1.msra.mxu0 0.0
        %400 = vmatprep.subr.mxu0 0.0
        %401 = vmatpush1.msra.mxu0 0.0
        %402 = vmatprep.subr.mxu0 0.0
        %403 = vmatpush1.msra.mxu0 0.0
        %404 = vmatprep.subr.mxu0 0.0
        %405 = vmatpush1.msra.mxu0 0.0
        %406 = vmatprep.subr.mxu0 0.0
        %407 = vmatpush1.msra.mxu0 0.0
        %408 = vmatprep.subr.mxu0 0.0
        %409 = vmatpush1.msra.mxu0 0.0
        %410 = vmatprep.subr.mxu0 0.0
        %411 = vmatpush1.msra.mxu0 0.0
        %412 = vmatprep.subr.mxu0 0.0
        %413 = vmatpush1.msra.mxu0 0.0
        %414 = vmatprep.subr.mxu0 0.0
        %415 = vmatpush1.msra.mxu0 0.0
        %416 = vmatprep.subr.mxu0 0.0
        %417 = vmatpush1.msra.mxu0 0.0
        %418 = vmatprep.subr.mxu0 0.0
        %419 = vmatpush1.msra.mxu0 0.0
        %420 = vmatprep.subr.mxu0 0.0
        %421 = vmatpush1.msra.mxu0 0.0
        %422 = vmatprep.subr.mxu0 0.0
        %423 = vmatpush1.msra.mxu0 0.0
        %424 = vmatprep.subr.mxu0 0.0
        %425 = vmatpush1.msra.mxu0 0.0
        %426 = vmatprep.subr.mxu0 0.0
        %427 = vmatpush1.msra.mxu0 0.0
        %428 = vmatprep.subr.mxu0 0.0
        %429 = vmatpush1.msra.mxu0 0.0
        %430 = vmatprep.subr.mxu0 0.0
        %431 = vmatpush1.msra.mxu0 0.0
        %432 = vmatprep.subr.mxu0 0.0
        %433 = vmatpush1.msra.mxu0 0.0
        %434 = vmatprep.subr.mxu0 0.0
        %435 = vmatpush1.msra.mxu0 0.0
        %436 = vmatprep.subr.mxu0 0.0
        %437 = vmatpush1.msra.mxu0 0.0
        %438 = vmatprep.subr.mxu0 0.0
        %439 = vmatpush1.msra.mxu0 0.0
        %440 = vmatprep.subr.mxu0 0.0
        %441 = vmatpush1.msra.mxu0 0.0
        %442 = vmatprep.subr.mxu0 0.0
        %443 = vmatpush1.msra.mxu0 0.0
        %444 = vmatprep.subr.mxu0 0.0
        %445 = vmatpush1.msra.mxu0 0.0
        %446 = vmatprep.mubr.f32.mxu0 0.0
        %447 = vmatmul.mubr.f32.gmra.mrb[0].mxu0 %v380
        %v448 = vpop.f32.mrb[0].mxu0
        %v449 = vadd.f32 %v376, %v448
        %v450 = vpop.f32.mrb[0].mxu0
        %451 = vdwg.mxu0
        %vm452 = vcmp.gt.f32.partialorder %v449, 0.0
        %v453 = vmul.f32 %v449, 0.01
        %v454 = vsel %vm452, %v449, %v453
        %v455 = vld [vmem:[%s3] sm:$0xff]
        %v456 = vld [vmem:[%s3 + $0x8] sm:$0xff]
        %v457 = vld [vmem:[%s3 + $0x10] sm:$0xff]
        %v458 = vld [vmem:[%s3 + $0x18] sm:$0xff]
        %v459 = vld [vmem:[%s3 + $0x20] sm:$0xff]
        %v460 = vld [vmem:[%s3 + $0x28] sm:$0xff]
        %v461 = vld [vmem:[%s3 + $0x30] sm:$0xff]
        %v462 = vld [vmem:[%s3 + $0x38] sm:$0xff]
        %v463 = vld [vmem:[%s4] sm:$0x1]
        %v465 = vlaneseq
        %v466 = vshrl.u32 %v465, 7
        %v467 = vsub.s32 0, %v466
        %v468 = vrot.slane %v463, %v467
        %vm470 = vcmask 523264
        %v472 = vsel %vm470, %v454, 0
        %474 = vmatprep.subr.mxu0 0.0
        %475 = vmatpush1.msra.mxu0 %v455
        %476 = vmatprep.subr.mxu0 0.0
        %477 = vmatpush1.msra.mxu0 %v456
        %478 = vmatprep.subr.mxu0 0.0
        %479 = vmatpush1.msra.mxu0 %v457
        %480 = vmatprep.subr.mxu0 0.0
        %481 = vmatpush1.msra.mxu0 %v458
        %482 = vmatprep.subr.mxu0 0.0
        %483 = vmatpush1.msra.mxu0 %v459
        %484 = vmatprep.subr.mxu0 0.0
        %485 = vmatpush1.msra.mxu0 %v460
        %486 = vmatprep.subr.mxu0 0.0
        %487 = vmatpush1.msra.mxu0 %v461
        %488 = vmatprep.subr.mxu0 0.0
        %489 = vmatpush1.msra.mxu0 %v462
        %490 = vmatprep.subr.mxu0 0.0
        %491 = vmatpush1.msra.mxu0 0.0
        %492 = vmatprep.subr.mxu0 0.0
        %493 = vmatpush1.msra.mxu0 0.0
        %494 = vmatprep.subr.mxu0 0.0
        %495 = vmatpush1.msra.mxu0 0.0
        %496 = vmatprep.subr.mxu0 0.0
        %497 = vmatpush1.msra.mxu0 0.0
        %498 = vmatprep.subr.mxu0 0.0
        %499 = vmatpush1.msra.mxu0 0.0
        %500 = vmatprep.subr.mxu0 0.0
        %501 = vmatpush1.msra.mxu0 0.0
        %502 = vmatprep.subr.mxu0 0.0
        %503 = vmatpush1.msra.mxu0 0.0
        %504 = vmatprep.subr.mxu0 0.0
        %505 = vmatpush1.msra.mxu0 0.0
        %506 = vmatprep.subr.mxu0 0.0
        %507 = vmatpush1.msra.mxu0 0.0
        %508 = vmatprep.subr.mxu0 0.0
        %509 = vmatpush1.msra.mxu0 0.0
        %510 = vmatprep.subr.mxu0 0.0
        %511 = vmatpush1.msra.mxu0 0.0
        %512 = vmatprep.subr.mxu0 0.0
        %513 = vmatpush1.msra.mxu0 0.0
        %514 = vmatprep.subr.mxu0 0.0
        %515 = vmatpush1.msra.mxu0 0.0
        %516 = vmatprep.subr.mxu0 0.0
        %517 = vmatpush1.msra.mxu0 0.0
        %518 = vmatprep.subr.mxu0 0.0
        %519 = vmatpush1.msra.mxu0 0.0
        %520 = vmatprep.subr.mxu0 0.0
        %521 = vmatpush1.msra.mxu0 0.0
        %522 = vmatprep.subr.mxu0 0.0
        %523 = vmatpush1.msra.mxu0 0.0
        %524 = vmatprep.subr.mxu0 0.0
        %525 = vmatpush1.msra.mxu0 0.0
        %526 = vmatprep.subr.mxu0 0.0
        %527 = vmatpush1.msra.mxu0 0.0
        %528 = vmatprep.subr.mxu0 0.0
        %529 = vmatpush1.msra.mxu0 0.0
        %530 = vmatprep.subr.mxu0 0.0
        %531 = vmatpush1.msra.mxu0 0.0
        %532 = vmatprep.subr.mxu0 0.0
        %533 = vmatpush1.msra.mxu0 0.0
        %534 = vmatprep.subr.mxu0 0.0
        %535 = vmatpush1.msra.mxu0 0.0
        %536 = vmatprep.subr.mxu0 0.0
        %537 = vmatpush1.msra.mxu0 0.0
        %538 = vmatprep.mubr.f32.mxu0 0.0
        %539 = vmatmul.mubr.f32.gmra.mrb[0].mxu0 %v472
        %v540 = vpop.f32.mrb[0].mxu0
        %v541 = vadd.f32 %v468, %v540
        %v542 = vpop.f32.mrb[0].mxu0
        %543 = vdwg.mxu0
        %vm544 = vcmp.gt.f32.partialorder %v541, 0.0
        %v545 = vmul.f32 %v541, 0.01
        %v546 = vsel %vm544, %v541, %v545
        %v547 = vld [vmem:[%s5] sm:$0xff]
        %v548 = vld [vmem:[%s5 + $0x8] sm:$0xff]
        %v549 = vld [vmem:[%s5 + $0x10] sm:$0xff]
        %v550 = vld [vmem:[%s5 + $0x18] sm:$0xff]
        %v551 = vld [vmem:[%s6] sm:$0x1]
        %v553 = vlaneseq
        %v554 = vshrl.u32 %v553, 7
        %v555 = vsub.s32 0, %v554
        %v556 = vrot.slane %v551, %v555
        %v559 = vsel %vm378, %v546, 0
        %561 = vmatprep.subr.mxu0 0.0
        %562 = vmatpush1.msra.mxu0 %v547
        %563 = vmatprep.subr.mxu0 0.0
        %564 = vmatpush1.msra.mxu0 %v548
        %565 = vmatprep.subr.mxu0 0.0
        %566 = vmatpush1.msra.mxu0 %v549
        %567 = vmatprep.subr.mxu0 0.0
        %568 = vmatpush1.msra.mxu0 %v550
        %569 = vmatprep.subr.mxu0 0.0
        %570 = vmatpush1.msra.mxu0 0.0
        %571 = vmatprep.subr.mxu0 0.0
        %572 = vmatpush1.msra.mxu0 0.0
        %573 = vmatprep.subr.mxu0 0.0
        %574 = vmatpush1.msra.mxu0 0.0
        %575 = vmatprep.subr.mxu0 0.0
        %576 = vmatpush1.msra.mxu0 0.0
        %577 = vmatprep.subr.mxu0 0.0
        %578 = vmatpush1.msra.mxu0 0.0
        %579 = vmatprep.subr.mxu0 0.0
        %580 = vmatpush1.msra.mxu0 0.0
        %581 = vmatprep.subr.mxu0 0.0
        %582 = vmatpush1.msra.mxu0 0.0
        %583 = vmatprep.subr.mxu0 0.0
        %584 = vmatpush1.msra.mxu0 0.0
        %585 = vmatprep.subr.mxu0 0.0
        %586 = vmatpush1.msra.mxu0 0.0
        %587 = vmatprep.subr.mxu0 0.0
        %588 = vmatpush1.msra.mxu0 0.0
        %589 = vmatprep.subr.mxu0 0.0
        %590 = vmatpush1.msra.mxu0 0.0
        %591 = vmatprep.subr.mxu0 0.0
        %592 = vmatpush1.msra.mxu0 0.0
        %593 = vmatprep.subr.mxu0 0.0
        %594 = vmatpush1.msra.mxu0 0.0
        %595 = vmatprep.subr.mxu0 0.0
        %596 = vmatpush1.msra.mxu0 0.0
        %597 = vmatprep.subr.mxu0 0.0
        %598 = vmatpush1.msra.mxu0 0.0
        %599 = vmatprep.subr.mxu0 0.0
        %600 = vmatpush1.msra.mxu0 0.0
        %601 = vmatprep.subr.mxu0 0.0
        %602 = vmatpush1.msra.mxu0 0.0
        %603 = vmatprep.subr.mxu0 0.0
        %604 = vmatpush1.msra.mxu0 0.0
        %605 = vmatprep.subr.mxu0 0.0
        %606 = vmatpush1.msra.mxu0 0.0
        %607 = vmatprep.subr.mxu0 0.0
        %608 = vmatpush1.msra.mxu0 0.0
        %609 = vmatprep.subr.mxu0 0.0
        %610 = vmatpush1.msra.mxu0 0.0
        %611 = vmatprep.subr.mxu0 0.0
        %612 = vmatpush1.msra.mxu0 0.0
        %613 = vmatprep.subr.mxu0 0.0
        %614 = vmatpush1.msra.mxu0 0.0
        %615 = vmatprep.subr.mxu0 0.0
        %616 = vmatpush1.msra.mxu0 0.0
        %617 = vmatprep.subr.mxu0 0.0
        %618 = vmatpush1.msra.mxu0 0.0
        %619 = vmatprep.subr.mxu0 0.0
        %620 = vmatpush1.msra.mxu0 0.0
        %621 = vmatprep.subr.mxu0 0.0
        %622 = vmatpush1.msra.mxu0 0.0
        %623 = vmatprep.subr.mxu0 0.0
        %624 = vmatpush1.msra.mxu0 0.0
        %625 = vmatprep.mubr.f32.mxu0 0.0
        %626 = vmatmul.mubr.f32.gmra.mrb[0].mxu0 %v559
        %v627 = vpop.f32.mrb[0].mxu0
        %v628 = vadd.f32 %v556, %v627
        %v629 = vpop.f32.mrb[0].mxu0
        %630 = vdwg.mxu0
        %vm631 = vcmask 130048
        %632 = vst.msk [vmem:[%s354] sm:$0xff] %vm631, %v628
        %v633 = vld [vmem:[%s7] sm:$0xff]
        %v634 = vld [vmem:[%s7 + $0x8] sm:$0xff]
        %v635 = vld [vmem:[%s7 + $0x10] sm:$0xff]
        %v636 = vld [vmem:[%s7 + $0x18] sm:$0xff]
        %v637 = vld [vmem:[%s8] sm:$0x1]
        %v639 = vlaneseq
        %v640 = vshrl.u32 %v639, 7
        %v641 = vsub.s32 0, %v640
        %v642 = vrot.slane %v637, %v641
        %644 = vmatprep.subr.mxu0 0.0
        %645 = vmatpush1.msra.mxu0 %v633
        %646 = vmatprep.subr.mxu0 0.0
        %647 = vmatpush1.msra.mxu0 %v634
        %648 = vmatprep.subr.mxu0 0.0
        %649 = vmatpush1.msra.mxu0 %v635
        %650 = vmatprep.subr.mxu0 0.0
        %651 = vmatpush1.msra.mxu0 %v636
        %652 = vmatprep.subr.mxu0 0.0
        %653 = vmatpush1.msra.mxu0 0.0
        %654 = vmatprep.subr.mxu0 0.0
        %655 = vmatpush1.msra.mxu0 0.0
        %656 = vmatprep.subr.mxu0 0.0
        %657 = vmatpush1.msra.mxu0 0.0
        %658 = vmatprep.subr.mxu0 0.0
        %659 = vmatpush1.msra.mxu0 0.0
        %660 = vmatprep.subr.mxu0 0.0
        %661 = vmatpush1.msra.mxu0 0.0
        %662 = vmatprep.subr.mxu0 0.0
        %663 = vmatpush1.msra.mxu0 0.0
        %664 = vmatprep.subr.mxu0 0.0
        %665 = vmatpush1.msra.mxu0 0.0
        %666 = vmatprep.subr.mxu0 0.0
        %667 = vmatpush1.msra.mxu0 0.0
        %668 = vmatprep.subr.mxu0 0.0
        %669 = vmatpush1.msra.mxu0 0.0
        %670 = vmatprep.subr.mxu0 0.0
        %671 = vmatpush1.msra.mxu0 0.0
        %672 = vmatprep.subr.mxu0 0.0
        %673 = vmatpush1.msra.mxu0 0.0
        %674 = vmatprep.subr.mxu0 0.0
        %675 = vmatpush1.msra.mxu0 0.0
        %676 = vmatprep.subr.mxu0 0.0
        %677 = vmatpush1.msra.mxu0 0.0
        %678 = vmatprep.subr.mxu0 0.0
        %679 = vmatpush1.msra.mxu0 0.0
        %680 = vmatprep.subr.mxu0 0.0
        %681 = vmatpush1.msra.mxu0 0.0
        %682 = vmatprep.subr.mxu0 0.0
        %683 = vmatpush1.msra.mxu0 0.0
        %684 = vmatprep.subr.mxu0 0.0
        %685 = vmatpush1.msra.mxu0 0.0
        %686 = vmatprep.subr.mxu0 0.0
        %687 = vmatpush1.msra.mxu0 0.0
        %688 = vmatprep.subr.mxu0 0.0
        %689 = vmatpush1.msra.mxu0 0.0
        %690 = vmatprep.subr.mxu0 0.0
        %691 = vmatpush1.msra.mxu0 0.0
        %692 = vmatprep.subr.mxu0 0.0
        %693 = vmatpush1.msra.mxu0 0.0
        %694 = vmatprep.subr.mxu0 0.0
        %695 = vmatpush1.msra.mxu0 0.0
        %696 = vmatprep.subr.mxu0 0.0
        %697 = vmatpush1.msra.mxu0 0.0
        %698 = vmatprep.subr.mxu0 0.0
        %699 = vmatpush1.msra.mxu0 0.0
        %700 = vmatprep.subr.mxu0 0.0
        %701 = vmatpush1.msra.mxu0 0.0
        %702 = vmatprep.subr.mxu0 0.0
        %703 = vmatpush1.msra.mxu0 0.0
        %704 = vmatprep.subr.mxu0 0.0
        %705 = vmatpush1.msra.mxu0 0.0
        %706 = vmatprep.subr.mxu0 0.0
        %707 = vmatpush1.msra.mxu0 0.0
        %708 = vmatprep.mubr.f32.mxu0 0.0
        %709 = vmatmul.mubr.f32.gmra.mrb[0].mxu0 %v559
        %v710 = vpop.f32.mrb[0].mxu0
        %v711 = vadd.f32 %v642, %v710
        %v712 = vpop.f32.mrb[0].mxu0
        %713 = vdwg.mxu0
        %714 = vst.msk [vmem:[%s361] sm:$0xff] %vm631, %v711
        %s715 = sand.u32 %s230, 1
        %s716 = scalar_lea.sflag [#allocation3], %s715
        %s717 = sand.u32 %s230, 1
        %s718 = smul.addr %s717, 8
        %s719 = scalar_lea.vmem [#allocation2], %s718
        %s720 = sand.u32 %s256, 1
        %s721 = scalar_lea.sflag [#allocation5], %s720
        %s722 = sand.u32 %s256, 1
        %s723 = smul.addr %s722, 8
        %s724 = scalar_lea.vmem [#allocation4], %s723
        // Predicated region
        $region57: #{tpu_custom_call.1} parent=55 // pred_check
          %p725 = pneg %p240
        $region58: #{tpu_custom_call.1} parent=55 // pred_check_branch
          %727 = sbr.rel (%p725) target = $region60
        $region59: #{tpu_custom_call.1} parent=55 // pred_region
          %s729 = ssub.s32 128, 128
          %730 = vsyncadd %s716, %s729
          %s731 = smul.addr %s28, 128
          %s732 = scalar_lea.hbm %s9, %s731
          %s734 = sshll.u32 %s719, 4
          %s735 = int_to_ptr.vmem [resolvable:$true] %s734
          %737 = dma.vmem_to_hbm [thread:$0]  %s735, 128, %s732, %s716
        $region60: #{tpu_custom_call.1} parent=55 // pred_fallthru
          _
        // Predicated region
        $region61: #{tpu_custom_call.1} parent=55 // pred_check
          %p738 = pneg %p266
        $region62: #{tpu_custom_call.1} parent=55 // pred_check_branch
          %740 = sbr.rel (%p738) target = $region64
        $region63: #{tpu_custom_call.1} parent=55 // pred_region
          %s742 = ssub.s32 128, 128
          %743 = vsyncadd %s721, %s742
          %s744 = smul.addr %s28, 128
          %s745 = scalar_lea.hbm %s10, %s744
          %s747 = sshll.u32 %s724, 4
          %s748 = int_to_ptr.vmem [resolvable:$true] %s747
          %750 = dma.vmem_to_hbm [thread:$0]  %s748, 128, %s745, %s721
        $region64: #{tpu_custom_call.1} parent=55 // pred_fallthru
          _
      $region56: #{tpu_custom_call.1} parent=5 // pred_fallthru
        _
      %p751 = scmp.le.s32.totalorder 2, %s23
      // Predicated region
      $region65: #{tpu_custom_call.1} parent=5 // pred_check
        %p752 = pneg %p751
      $region66: #{tpu_custom_call.1} parent=5 // pred_check_branch
        %754 = sbr.rel (%p752) target = $region68
      $region67: #{tpu_custom_call.1} parent=5 // pred_region
        %s755 = ssub.s32 %s23, 2
        // Predicated region
        $region69: #{tpu_custom_call.1} parent=67 // pred_check
          %p756 = pneg %p246
        $region70: #{tpu_custom_call.1} parent=67 // pred_check_branch
          %758 = sbr.rel (%p756) target = $region72
        $region71: #{tpu_custom_call.1} parent=67 // pred_region
          %s759 = sand.u32 %s231, 1
          %s760 = scalar_lea.sflag [#allocation3], %s759
          %s761 = sand.u32 %s231, 1
          %s762 = smul.addr %s761, 8
          %s763 = scalar_lea.vmem [#allocation2], %s762
          %764 = dma.done %s760, 128
        $region72: #{tpu_custom_call.1} parent=67 // pred_fallthru
          _
        // Predicated region
        $region73: #{tpu_custom_call.1} parent=67 // pred_check
          %p765 = pneg %p272
        $region74: #{tpu_custom_call.1} parent=67 // pred_check_branch
          %767 = sbr.rel (%p765) target = $region76
        $region75: #{tpu_custom_call.1} parent=67 // pred_region
          %s768 = sand.u32 %s257, 1
          %s769 = scalar_lea.sflag [#allocation5], %s768
          %s770 = sand.u32 %s257, 1
          %s771 = smul.addr %s770, 8
          %s772 = scalar_lea.vmem [#allocation4], %s771
          %773 = dma.done %s769, 128
        $region76: #{tpu_custom_call.1} parent=67 // pred_fallthru
          _
      $region68: #{tpu_custom_call.1} parent=5 // pred_fallthru
        _
    $region6: #{tpu_custom_call.1} parent=1 // loop_footer
      %s27 = sadd.s32 1, %s23
    $region7: #{tpu_custom_call.1} parent=1 // loop_footer_branch
      %22 = sbr.rel target = $region3
    $region8: #{tpu_custom_call.1} parent=1 // loop_exit
      _
    %774 = vsyncpa [#allocation3], 1
    %s775 = scalar_lea.sflag [#allocation3], 1
    %776 = vsyncpa %s775, 1
    %777 = vsyncpa [#allocation5], 1
    %s778 = scalar_lea.sflag [#allocation5], 1
    %779 = vsyncpa %s778, 1

</llo_original>
